<compile_context>
chip_gen: v6e
topology: v6e:2x2x1
jax: 0.10.0
libtpu: 0.0.40
codegen_flags: <defaults>
</compile_context>

<pallas_src>
import functools

import jax
import jax.numpy as jnp
from jax import lax
from jax.experimental import pallas as pl
from jax.experimental.pallas import tpu as pltpu


_ACTIVATIONS = {
    "tanh": jnp.tanh,
    "relu": lambda v: jnp.maximum(v, 0.0),
    "sigmoid": jax.nn.sigmoid,
    "gelu": jax.nn.gelu,
}


def _round_up(x, m):
    return ((x + m - 1) // m) * m


def _cdiv(a, b):
    return -(-a // b)


def _vmem_capacity_bytes():
    """Generation-aware physical VMEM per core, with a conservative fallback."""
    try:
        info = pltpu.get_tpu_info()
        cap = getattr(info, "vmem_capacity_bytes", None)
        if cap:
            return int(cap)
    except Exception:
        pass
    return 64 * 1024 * 1024  # v7x per-TC size: safe lower bound everywhere


# --------------------------------------------------------------------------
# Kernels
# --------------------------------------------------------------------------
def _mlp_resident_kernel(x_ref, w_first_ref, b_first_ref, w_mid_ref, b_mid_ref,
                         w_last_ref, b_last_ref, o_ref, *, n_mid, act,
                         unroll_static, loop_unroll):
    """All weights resident in VMEM; one batch tile per grid step.

    x_ref:       (TB, Din_p)                      [pipelined]
    w_first_ref: (Din_p, H_p)     b_first_ref: (1, H_p)        [resident]
    w_mid_ref:   (n_mid, H_p, H_p) b_mid_ref:  (n_mid, 1, H_p) [resident]
    w_last_ref:  (H_p, Dout_p)    b_last_ref:  (1, Dout_p)     [resident]
    o_ref:       (TB, Dout_p)                     [pipelined]
    """
    cdt = w_first_ref.dtype  # MXU operand / carry dtype (bf16 or f32)

    def layer(h, w, b):
        # MXU in cdt, f32 accumulate; bias+act epilogue in f32; carry in cdt.
        hh = jnp.dot(h, w, preferred_element_type=jnp.float32)
        return act(hh + b.astype(jnp.float32)).astype(cdt)

    h = layer(x_ref[...].astype(cdt), w_first_ref[...], b_first_ref[...])

    if unroll_static:
        for l in range(n_mid):
            h = layer(h, w_mid_ref[l], b_mid_ref[l])
    else:
        h = lax.fori_loop(
            0, n_mid,
            lambda l, hh: layer(hh, w_mid_ref[l], b_mid_ref[l]),
            h, unroll=loop_unroll)

    out = jnp.dot(h, w_last_ref[...], preferred_element_type=jnp.float32)
    o_ref[...] = (out + b_last_ref[...].astype(jnp.float32)).astype(o_ref.dtype)


def _mlp_stream_kernel(x_ref, w_first_ref, b_first_ref, w_mid_ref, b_mid_ref,
                       w_last_ref, b_last_ref, o_ref, h_ref, *, act):
    """Mid-layer weights streamed via an inner 'arbitrary' layer grid axis.

    Grid = (batch_tiles, n_mid).  h_ref is VMEM scratch carrying the
    activation across layer steps of one batch tile.
    w_mid_ref block: (1, H_p, H_p); b_mid_ref block: (1, 1, H_p).
    """
    l = pl.program_id(1)
    n_mid = pl.num_programs(1)
    cdt = w_first_ref.dtype

    @pl.when(l == 0)
    def _():
        h0 = jnp.dot(x_ref[...].astype(cdt), w_first_ref[...],
                     preferred_element_type=jnp.float32)
        h_ref[...] = act(h0 + b_first_ref[...].astype(jnp.float32)
                         ).astype(h_ref.dtype)

    hh = jnp.dot(h_ref[...], w_mid_ref[0], preferred_element_type=jnp.float32)
    h_ref[...] = act(hh + b_mid_ref[0].astype(jnp.float32)).astype(h_ref.dtype)

    @pl.when(l == n_mid - 1)
    def _():
        out = jnp.dot(h_ref[...], w_last_ref[...],
                      preferred_element_type=jnp.float32)
        o_ref[...] = (out + b_last_ref[...].astype(jnp.float32)
                      ).astype(o_ref.dtype)


# --------------------------------------------------------------------------
# Wrapper
# --------------------------------------------------------------------------
def nn_basic_forward(x, params, *, batch_tile=None, activation="tanh",
                     compute_dtype=None, force_stream=False):
    """Fused NNBasic forward pass with a single pallas_call."""
    w_first, b_first, w_mid, b_mid, w_last, b_last = params
    B, d_in = x.shape
    n_mid, H, _ = w_mid.shape
    d_out = w_last.shape[-1]
    xdt = x.dtype
    cdt = (jnp.dtype(compute_dtype) if compute_dtype is not None
           else jnp.dtype(w_first.dtype))

    # ---- feature padding (see zero-padding correctness note at top) -------
    H_p = _round_up(H, 128)
    d_out_p = _round_up(d_out, 128)
    # Keep x un-padded along features when d_in <= 128 (full-dim block is
    # legal); only lane-pad genuinely wide inputs.
    d_in_p = d_in if d_in <= 128 else _round_up(d_in, 128)

    def pad2(a, r, c):
        return jnp.pad(a, ((0, r - a.shape[0]), (0, c - a.shape[1])))

    def pad3(a, r, c):
        return jnp.pad(a, ((0, 0), (0, r - a.shape[1]), (0, c - a.shape[2])))

    w_first_p = pad2(w_first, d_in_p, H_p).astype(cdt)
    b_first_p = pad2(b_first, 1, H_p)
    w_mid_p = pad3(w_mid, H_p, H_p).astype(cdt)
    b_mid_p = pad3(b_mid, 1, H_p)
    w_last_p = pad2(w_last, H_p, d_out_p).astype(cdt)
    b_last_p = pad2(b_last, 1, d_out_p)

    # ---- VMEM budget (generation-aware) ------------------------------------
    pack = 16 if jnp.dtype(xdt).itemsize == 2 else 8
    w_item = jnp.dtype(cdt).itemsize
    x_item = jnp.dtype(xdt).itemsize

    vmem_cap = _vmem_capacity_bytes()
    vmem_usable = max(vmem_cap - 12 * 1024 * 1024, 24 * 1024 * 1024)

    def _vmem_need(tb_, streaming):
        io = 2 * tb_ * (d_in_p + d_out_p) * x_item          # dbl-buffered x/out
        acts = tb_ * H_p * (8 + w_item) + tb_ * d_out_p * 4  # f32 temporaries
        first_last = ((d_in_p * H_p + H_p * d_out_p) * w_item
                      + (2 * H_p + d_out_p) * 4)
        if streaming:
            mid = 2 * (H_p * H_p + H_p) * w_item             # dbl-buffered layer
            carry = tb_ * H_p * w_item                       # h scratch
        else:
            mid = n_mid * (H_p * H_p + H_p) * w_item         # resident stack
            carry = 0
        return first_last + mid + io + acts + carry

    # ---- batch tiling ------------------------------------------------------
    if batch_tile is not None:
        tb = max(pack, _round_up(batch_tile, pack))
    else:
        tb = 512 if B >= 2048 else 256                 # MXU-friendly target
        # keep >= 2 grid steps (pipelining + v7x megacore) when B allows it
        two_step = max(pack, _round_up(_cdiv(B, 2), pack))
        tb = min(tb, two_step)
    tb = min(tb, _round_up(B, pack))
    # shrink tb if even the streaming footprint would not fit VMEM
    while tb > pack and _vmem_need(tb, streaming=True) > vmem_usable:
        tb = max(pack, _round_up(tb // 2, pack))

    B_p = _round_up(B, tb)
    if B_p != B or d_in_p != d_in:
        x_p = jnp.pad(x, ((0, B_p - B), (0, d_in_p - d_in)))
    else:
        x_p = x
    grid_b = B_p // tb

    # ---- mode selection + VMEM limit ---------------------------------------
    use_stream = bool(force_stream) or (
        _vmem_need(tb, streaming=False) > 0.85 * vmem_usable)
    need = _vmem_need(tb, use_stream)
    vmem_limit = int(min(vmem_usable, max(int(need * 1.25), 16 * 1024 * 1024)))

    # ---- cost estimate for the XLA scheduler -------------------------------
    mm_terms = d_in_p * H_p + n_mid * H_p * H_p + H_p * d_out_p
    flops = 2 * B_p * mm_terms
    transc = 0 if activation == "relu" else B_p * H_p * (n_mid + 1)
    bytes_acc = (B_p * (d_in_p + d_out_p) * x_item
                 + mm_terms * w_item
                 + ((n_mid + 1) * H_p + d_out_p) * 4)
    cost = pl.CostEstimate(flops=flops, transcendentals=transc,
                           bytes_accessed=bytes_acc)

    act = _ACTIVATIONS[activation]
    resident = pl.BlockSpec(memory_space=pltpu.MemorySpace.VMEM)
    out_shape = jax.ShapeDtypeStruct((B_p, d_out_p), xdt)

    if not use_stream:
        unroll_static = n_mid <= 8
        loop_unroll = 2 if (n_mid % 2 == 0) else 1
        kernel = functools.partial(
            _mlp_resident_kernel, n_mid=n_mid, act=act,
            unroll_static=unroll_static, loop_unroll=loop_unroll)
        out_p = pl.pallas_call(
            kernel,
            out_shape=out_shape,
            grid=(grid_b,),
            in_specs=[
                pl.BlockSpec((tb, d_in_p), lambda i: (i, 0)),   # x (pipelined)
                resident, resident,                              # first layer
                resident, resident,                              # mid stack
                resident, resident,                              # last layer
            ],
            out_specs=pl.BlockSpec((tb, d_out_p), lambda i: (i, 0)),
            compiler_params=pltpu.CompilerParams(
                dimension_semantics=("parallel",),
                vmem_limit_bytes=vmem_limit),
            cost_estimate=cost,
        )(x_p, w_first_p, b_first_p, w_mid_p, b_mid_p, w_last_p, b_last_p)
    else:
        kernel = functools.partial(_mlp_stream_kernel, act=act)
        out_p = pl.pallas_call(
            kernel,
            out_shape=out_shape,
            grid=(grid_b, n_mid),
            in_specs=[
                pl.BlockSpec((tb, d_in_p), lambda i, l: (i, 0)),        # x
                resident, resident,                                      # first
                pl.BlockSpec((1, H_p, H_p), lambda i, l: (l, 0, 0)),     # W_mid[l]
                pl.BlockSpec((1, 1, H_p), lambda i, l: (l, 0, 0)),       # b_mid[l]
                resident, resident,                                      # last
            ],
            out_specs=pl.BlockSpec((tb, d_out_p), lambda i, l: (i, 0)),
            scratch_shapes=[pltpu.VMEM((tb, H_p), cdt)],                 # h carry
            compiler_params=pltpu.CompilerParams(
                dimension_semantics=("parallel", "arbitrary"),
                vmem_limit_bytes=vmem_limit),
            cost_estimate=cost,
        )(x_p, w_first_p, b_first_p, w_mid_p, b_mid_p, w_last_p, b_last_p)

    return out_p[:B, :d_out]


# --------------------------------------------------------------------------
# Parameters / reference
# --------------------------------------------------------------------------
def init_params(key, input_dim, hidden_dim, out_dim, n_layers,
                dtype=jnp.float32):
    """Deterministic synthetic parameters, shapes matching NNBasic.__init__.

    Weights are stored pre-transposed as (in_features, out_features) so the
    kernel computes y = x @ W + b (== torch.nn.Linear's x @ W_t.T + b).
    """
    assert n_layers >= 3, "n_layers must >= 3"
    n_mid = n_layers - 2
    keys = jax.random.split(key, 2 * n_layers)

    def linear(kw, kb, fan_in, fan_out):
        bound = float(fan_in) ** -0.5   # torch.nn.Linear default init range
        w = jax.random.uniform(kw, (fan_in, fan_out), jnp.float32,
                               -bound, bound).astype(dtype)
        b = jax.random.uniform(kb, (1, fan_out), jnp.float32,
                               -bound, bound).astype(dtype)
        return w, b

    w_first, b_first = linear(keys[0], keys[1], input_dim, hidden_dim)

    w_mid_list, b_mid_list = [], []
    for l in range(n_mid):
        w, b = linear(keys[2 + 2 * l], keys[3 + 2 * l], hidden_dim, hidden_dim)
        w_mid_list.append(w)
        b_mid_list.append(b[None])                 # -> (1, 1, H)
    w_mid = jnp.stack(w_mid_list, axis=0)          # (n_mid, H, H)
    b_mid = jnp.concatenate(b_mid_list, axis=0)    # (n_mid, 1, H)

    w_last, b_last = linear(keys[-2], keys[-1], hidden_dim, out_dim)
    return (w_first, b_first, w_mid, b_mid, w_last, b_last)


def _reference_forward(x, params, activation="tanh"):
    """Pure-JAX f32 reference matching NNBasic.forward."""
    act = _ACTIVATIONS[activation]
    hp = jax.lax.Precision.HIGHEST
    w_first, b_first, w_mid, b_mid, w_last, b_last = params
    h = act(jnp.dot(x, w_first, precision=hp) + b_first)
    for l in range(w_mid.shape[0]):
        h = act(jnp.dot(h, w_mid[l], precision=hp) + b_mid[l])
    return jnp.dot(h, w_last, precision=hp) + b_last


# --------------------------------------------------------------------------
# Self-test
# --------------------------------------------------------------------------
if __name__ == "__main__":
    def run_case(batch, input_dim, hidden_dim, out_dim, n_layers, dtype,
                 batch_tile, tol, force_stream=False):
        key = jax.random.PRNGKey(0)
        kx, kp = jax.random.split(key)
        x = jax.random.normal(kx, (batch, input_dim), jnp.float32).astype(dtype)
        params = init_params(kp, input_dim, hidden_dim, out_dim, n_layers,
                             dtype=dtype)

        out = nn_basic_forward(x, params, batch_tile=batch_tile,
                               force_stream=force_stream)
        out = jax.block_until_ready(out)

        ref = _reference_forward(
            x.astype(jnp.float32),
            tuple(p.astype(jnp.float32) for p in params))
        assert out.shape == (batch, out_dim)
        err = float(jnp.max(jnp.abs(out.astype(jnp.float32) - ref)))
        assert jnp.allclose(out.astype(jnp.float32), ref,
                            atol=tol, rtol=tol), f"max abs err={err}"

    # f32 resident path: auto batch tile (>=2 grid steps), static unroll of
    # 2 mid layers, un-padded d_in=16, lane-padded H/d_out.
    run_case(batch=48, input_dim=16, hidden_dim=32, out_dim=8, n_layers=4,
             dtype=jnp.float32, batch_tile=None, tol=2e-3)

    # bf16 resident path: ragged batch (padded internally), bf16 MXU with f32
    # accumulation and bf16 layer carry, static unroll of 5 mid layers.
    run_case(batch=37, input_dim=16, hidden_dim=32, out_dim=8, n_layers=7,
             dtype=jnp.bfloat16, batch_tile=None, tol=1e-1)

    # f32 resident path, deep: fori_loop over 10 mid layers (unroll=2) with
    # dynamic indexing into the resident weight stack.
    run_case(batch=64, input_dim=16, hidden_dim=32, out_dim=8, n_layers=12,
             dtype=jnp.float32, batch_tile=None, tol=2e-3)

    # Streaming fallback (forced): mid-layer weights streamed over an inner
    # 'arbitrary' layer grid axis, activation carried in VMEM scratch.
    run_case(batch=40, input_dim=16, hidden_dim=32, out_dim=8, n_layers=5,
             dtype=jnp.float32, batch_tile=None, tol=2e-3, force_stream=True)

    print("KERNEL_OK")
</pallas_src>

<mosaic_0001>
module attributes {stable_mosaic.version = 11 : i64} {
  func.func @_mlp_resident_kernel(%arg0: i32, %arg1: memref<24x16xf32, #tpu.memory_space<vmem>>, %arg2: memref<16x128xf32, #tpu.memory_space<vmem>>, %arg3: memref<1x128xf32, #tpu.memory_space<vmem>>, %arg4: memref<2x128x128xf32, #tpu.memory_space<vmem>>, %arg5: memref<2x1x128xf32, #tpu.memory_space<vmem>>, %arg6: memref<128x128xf32, #tpu.memory_space<vmem>>, %arg7: memref<1x128xf32, #tpu.memory_space<vmem>>, %arg8: memref<24x128xf32, #tpu.memory_space<vmem>>) attributes {dimension_semantics = [#tpu.dimension_semantics<parallel>], iteration_bounds = array<i64: 2>, scalar_prefetch = 0 : i64, scratch_operands = 0 : i64, tpu.core_type = #tpu.core_type<tc>, window_params = [{transform_indices = @transform_0, window_bounds = array<i64: 24, 16>}, {pipeline_mode = #tpu.pipeline_mode<synchronous>, transform_indices = @transform_1, window_bounds = array<i64: 16, 128>}, {pipeline_mode = #tpu.pipeline_mode<synchronous>, transform_indices = @transform_2, window_bounds = array<i64: 1, 128>}, {pipeline_mode = #tpu.pipeline_mode<synchronous>, transform_indices = @transform_3, window_bounds = array<i64: 2, 128, 128>}, {pipeline_mode = #tpu.pipeline_mode<synchronous>, transform_indices = @transform_4, window_bounds = array<i64: 2, 1, 128>}, {pipeline_mode = #tpu.pipeline_mode<synchronous>, transform_indices = @transform_5, window_bounds = array<i64: 128, 128>}, {pipeline_mode = #tpu.pipeline_mode<synchronous>, transform_indices = @transform_6, window_bounds = array<i64: 1, 128>}, {transform_indices = @transform_7, window_bounds = array<i64: 24, 128>}]} {
    %c0 = arith.constant 0 : index
    %c0_0 = arith.constant 0 : index
    %0 = vector.load %arg1[%c0, %c0_0] : memref<24x16xf32, #tpu.memory_space<vmem>>, vector<24x16xf32>
    %c0_1 = arith.constant 0 : index
    %c0_2 = arith.constant 0 : index
    %1 = vector.load %arg2[%c0_1, %c0_2] : memref<16x128xf32, #tpu.memory_space<vmem>>, vector<16x128xf32>
    %c0_3 = arith.constant 0 : index
    %c0_4 = arith.constant 0 : index
    %2 = vector.load %arg3[%c0_3, %c0_4] : memref<1x128xf32, #tpu.memory_space<vmem>>, vector<1x128xf32>
    %cst = arith.constant dense<0.000000e+00> : vector<24x128xf32>
    %3 = tpu.matmul %0, %1, %cst {dimension_numbers = #tpu.dot_dimension_numbers<[1], [0], [0], [1], [0, 0, 1, 1], [], []>} : vector<24x16xf32>, vector<16x128xf32>, vector<24x128xf32> -> vector<24x128xf32>
    %4 = vector.broadcast %2 : vector<1x128xf32> to vector<24x128xf32>
    %5 = arith.addf %3, %4 : vector<24x128xf32>
    %6 = math.tanh %5 : vector<24x128xf32>
    %c0_5 = arith.constant 0 : index
    %c0_6 = arith.constant 0 : index
    %c0_7 = arith.constant 0 : index
    %7 = vector.load %arg4[%c0_5, %c0_6, %c0_7] : memref<2x128x128xf32, #tpu.memory_space<vmem>>, vector<1x128x128xf32>
    %8 = vector.shape_cast %7 : vector<1x128x128xf32> to vector<128x128xf32>
    %c0_8 = arith.constant 0 : index
    %c0_9 = arith.constant 0 : index
    %c0_10 = arith.constant 0 : index
    %9 = vector.load %arg5[%c0_8, %c0_9, %c0_10] : memref<2x1x128xf32, #tpu.memory_space<vmem>>, vector<1x1x128xf32>
    %10 = vector.shape_cast %9 : vector<1x1x128xf32> to vector<1x128xf32>
    %cst_11 = arith.constant dense<0.000000e+00> : vector<24x128xf32>
    %11 = tpu.matmul %6, %8, %cst_11 {dimension_numbers = #tpu.dot_dimension_numbers<[1], [0], [0], [1], [0, 0, 1, 1], [], []>} : vector<24x128xf32>, vector<128x128xf32>, vector<24x128xf32> -> vector<24x128xf32>
    %12 = vector.broadcast %10 : vector<1x128xf32> to vector<24x128xf32>
    %13 = arith.addf %11, %12 : vector<24x128xf32>
    %14 = math.tanh %13 : vector<24x128xf32>
    %c1 = arith.constant 1 : index
    %c0_12 = arith.constant 0 : index
    %c0_13 = arith.constant 0 : index
    %15 = vector.load %arg4[%c1, %c0_12, %c0_13] : memref<2x128x128xf32, #tpu.memory_space<vmem>>, vector<1x128x128xf32>
    %16 = vector.shape_cast %15 : vector<1x128x128xf32> to vector<128x128xf32>
    %c1_14 = arith.constant 1 : index
    %c0_15 = arith.constant 0 : index
    %c0_16 = arith.constant 0 : index
    %17 = vector.load %arg5[%c1_14, %c0_15, %c0_16] : memref<2x1x128xf32, #tpu.memory_space<vmem>>, vector<1x1x128xf32>
    %18 = vector.shape_cast %17 : vector<1x1x128xf32> to vector<1x128xf32>
    %cst_17 = arith.constant dense<0.000000e+00> : vector<24x128xf32>
    %19 = tpu.matmul %14, %16, %cst_17 {dimension_numbers = #tpu.dot_dimension_numbers<[1], [0], [0], [1], [0, 0, 1, 1], [], []>} : vector<24x128xf32>, vector<128x128xf32>, vector<24x128xf32> -> vector<24x128xf32>
    %20 = vector.broadcast %18 : vector<1x128xf32> to vector<24x128xf32>
    %21 = arith.addf %19, %20 : vector<24x128xf32>
    %22 = math.tanh %21 : vector<24x128xf32>
    %c0_18 = arith.constant 0 : index
    %c0_19 = arith.constant 0 : index
    %23 = vector.load %arg6[%c0_18, %c0_19] : memref<128x128xf32, #tpu.memory_space<vmem>>, vector<128x128xf32>
    %cst_20 = arith.constant dense<0.000000e+00> : vector<24x128xf32>
    %24 = tpu.matmul %22, %23, %cst_20 {dimension_numbers = #tpu.dot_dimension_numbers<[1], [0], [0], [1], [0, 0, 1, 1], [], []>} : vector<24x128xf32>, vector<128x128xf32>, vector<24x128xf32> -> vector<24x128xf32>
    %c0_21 = arith.constant 0 : index
    %c0_22 = arith.constant 0 : index
    %25 = vector.load %arg7[%c0_21, %c0_22] : memref<1x128xf32, #tpu.memory_space<vmem>>, vector<1x128xf32>
    %26 = vector.broadcast %25 : vector<1x128xf32> to vector<24x128xf32>
    %27 = arith.addf %24, %26 : vector<24x128xf32>
    %c0_23 = arith.constant 0 : index
    %c0_24 = arith.constant 0 : index
    %28 = vector.load %arg8[%c0_23, %c0_24] : memref<24x128xf32, #tpu.memory_space<vmem>>, vector<24x128xf32>
    tpu.vector_store %arg8[%c0_23, %c0_24], %27 {strides = array<i32>} : memref<24x128xf32, #tpu.memory_space<vmem>>, vector<24x128xf32>,
    return
  }
  func.func @transform_0(%arg0: i32) -> (i32, i32) {
    %c0_i32 = arith.constant 0 : i32
    %c0_i32_0 = arith.constant 0 : i32
    return %arg0, %c0_i32 : i32, i32
  }
  func.func @transform_1(%arg0: i32) -> (i32, i32) {
    %c0_i32 = arith.constant 0 : i32
    %c0_i32_0 = arith.constant 0 : i32
    %c0_i32_1 = arith.constant 0 : i32
    return %c0_i32, %c0_i32_0 : i32, i32
  }
  func.func @transform_2(%arg0: i32) -> (i32, i32) {
    %c0_i32 = arith.constant 0 : i32
    %c0_i32_0 = arith.constant 0 : i32
    %c0_i32_1 = arith.constant 0 : i32
    return %c0_i32, %c0_i32_0 : i32, i32
  }
  func.func @transform_3(%arg0: i32) -> (i32, i32, i32) {
    %c0_i32 = arith.constant 0 : i32
    %c0_i32_0 = arith.constant 0 : i32
    %c0_i32_1 = arith.constant 0 : i32
    %c0_i32_2 = arith.constant 0 : i32
    return %c0_i32, %c0_i32_0, %c0_i32_1 : i32, i32, i32
  }
  func.func @transform_4(%arg0: i32) -> (i32, i32, i32) {
    %c0_i32 = arith.constant 0 : i32
    %c0_i32_0 = arith.constant 0 : i32
    %c0_i32_1 = arith.constant 0 : i32
    %c0_i32_2 = arith.constant 0 : i32
    return %c0_i32, %c0_i32_0, %c0_i32_1 : i32, i32, i32
  }
  func.func @transform_5(%arg0: i32) -> (i32, i32) {
    %c0_i32 = arith.constant 0 : i32
    %c0_i32_0 = arith.constant 0 : i32
    %c0_i32_1 = arith.constant 0 : i32
    return %c0_i32, %c0_i32_0 : i32, i32
  }
  func.func @transform_6(%arg0: i32) -> (i32, i32) {
    %c0_i32 = arith.constant 0 : i32
    %c0_i32_0 = arith.constant 0 : i32
    %c0_i32_1 = arith.constant 0 : i32
    return %c0_i32, %c0_i32_0 : i32, i32
  }
  func.func @transform_7(%arg0: i32) -> (i32, i32) {
    %c0_i32 = arith.constant 0 : i32
    %c0_i32_0 = arith.constant 0 : i32
    return %arg0, %c0_i32 : i32, i32
  }
}

</mosaic_0001>

<llo_original>
// kernel: tpu_custom_call.1
$region0: #{tpu_custom_call.1}
  #allocation0 [shape = 'u32[]', space=smem, size = 0x4, offset = 0x4, fixed_abs, tag = 'smem constant byte address 0x4 - core index']
  #allocation1 [shape = 'u32[144,128]{1,0:T(1,128)}', space=vmem, size = 0x12000, scoped, tag = 'internal scratch']
  %s0 = inlined_call_operand.vmem [shape: f32[48,16], index: 0, kind: input, shape index: {}]
  %s1 = inlined_call_operand.vmem [shape: f32[16,128], index: 1, kind: input, shape index: {}]
  %s2 = inlined_call_operand.vmem [shape: f32[1,128], index: 2, kind: input, shape index: {}]
  %s3 = inlined_call_operand.hbm [shape: f32[2,128,128], index: 3, kind: input, shape index: {}]
  %s4 = inlined_call_operand.vmem [shape: f32[2,1,128], index: 4, kind: input, shape index: {}]
  %s5 = inlined_call_operand.hbm [shape: f32[128,128], index: 5, kind: input, shape index: {}]
  %s6 = inlined_call_operand.vmem [shape: f32[1,128], index: 6, kind: input, shape index: {}]
  %s7 = inlined_call_operand.hbm [shape: f32[48,128], index: 7, kind: output, shape index: {}]
  %s8 = sld [smem:[#allocation0]]
  $region69: #{tpu_custom_call.1} parent=0
    _
  %s10 = ssub.s32 1, %s8
  %s11 = scalar_select 0, %s10, %s8
  $region1: #{tpu_custom_call.1} parent=0
    #allocation2 [shape = 'u8[131072]{0}', space=vmem, size = 0x20000, scoped, tag = 'input window, operand 3, single buffered']
    #allocation3 [shape = 's32[2]{0}', space=sflag, size = 0x8, scoped, tag = 'scoped memory for tpu_custom_call.1']
    #allocation4 [shape = 's32[2]{0}', space=sflag, size = 0x8, scoped, tag = 'scoped memory for tpu_custom_call.1']
    #allocation5 [shape = 'u8[65536]{0}', space=vmem, size = 0x10000, scoped, tag = 'input window, operand 5, single buffered']
    #allocation6 [shape = 's32[1]{0}', space=sflag, size = 0x4, scoped, tag = 'scoped memory for tpu_custom_call.1']
    #allocation7 [shape = 'u8[24576]{0}', space=vmem, size = 0x6000, scoped, tag = 'output window, operand 0']
    %12 = vsyncpa [#allocation3], 0
    %13 = vsyncpa [#allocation6], 0
    %14 = vsyncpa [#allocation4], 0
    %s15 = scalar_lea.sflag [#allocation4], 1
    %16 = vsyncpa %s15, 0
    loop: start=0, step=1, limit=4
    $region2: #{tpu_custom_call.1} parent=1 // loop_pre_header
      _
    $region3: #{tpu_custom_call.1} parent=1 // loop_header
      %s18 = sphi 0, %s22
      %p19 = scmp.ge.s32.totalorder %s18, 4
      %s28 = sphi 0, %s30
      %s31 = sphi 0, %s28
      %s32 = sphi 0, %s31
      %s48 = sphi 0, %s32
      %s52 = sphi 0, %s52
      %s54 = sphi 0, %s52
      %s55 = sphi 0, %s54
      %s69 = sphi 0, %s55
      %s73 = sphi 0, %s73
      %s75 = sphi 0, %s73
      %s76 = sphi 0, %s75
      %s90 = sphi 0, %s76
      %s94 = sphi 0, %s94
      %s96 = sphi 0, %s94
      %s97 = sphi 0, %s96
      %s111 = sphi 0, %s97
      %s115 = sphi 0, %s115
      %s117 = sphi 0, %s115
      %s118 = sphi 0, %s117
      %s132 = sphi 0, %s118
      %s136 = sphi 0, %s136
      %s138 = sphi 0, %s136
      %s139 = sphi 0, %s138
      %s153 = sphi 0, %s139
      %s157 = sphi 0, %s157
      %s159 = sphi 0, %s157
      %s160 = sphi 0, %s159
      %s174 = sphi 0, %s160
      %s180 = sphi 0, %s182
      %s183 = sphi 0, %s180
      %s184 = sphi 0, %s183
      %s200 = sphi 0, %s184
    $region4: #{tpu_custom_call.1} parent=1 // loop_header_branch
      %21 = sbr.rel (%p19) target = $region8
    $region5: #{tpu_custom_call.1} parent=1 // loop_body
      %s23 = ssub.s32 %s18, 1
      %s24 = ssub.s32 %s18, 2
      %s25 = sadd.s32 %s18, 1
      %s26 = ssub.s32 %s18, %s25
      %p27 = scmp.eq.s32.totalorder %s26, 0
      %s29 = sadd.s32 %s28, 1
      %s30 = scalar_select %p27, %s28, %s29
      %p33 = pneg %p27
      %p34 = scmp.eq.s32.totalorder %s18, 1
      %p35 = por %p33, %p34
      %p36 = scmp.ne.s32.totalorder %s28, %s31
      %p37 = scmp.eq.s32.totalorder %s18, 0
      %p38 = por %p36, %p37
      %p39 = scmp.ne.s32.totalorder %s28, %s31
      %p40 = scmp.eq.s32.totalorder %s23, 1
      %p41 = por %p39, %p40
      %p42 = scmp.ne.s32.totalorder %s31, %s32
      %p43 = scmp.eq.s32.totalorder %s23, 0
      %p44 = por %p42, %p43
      %p45 = scmp.ne.s32.totalorder %s31, %s32
      %p46 = scmp.eq.s32.totalorder %s24, 1
      %p47 = por %p45, %p46
      %p49 = scmp.ne.s32.totalorder %s32, %s48
      %p50 = scmp.eq.s32.totalorder %s24, 0
      %p51 = por %p49, %p50
      %s53 = sadd.s32 %s52, 1
      %p56 = scmp.eq.s32.totalorder %s18, 1
      %p57 = scmp.ne.s32.totalorder %s52, %s54
      %p58 = scmp.eq.s32.totalorder %s18, 0
      %p59 = por %p57, %p58
      %p60 = scmp.ne.s32.totalorder %s52, %s54
      %p61 = scmp.eq.s32.totalorder %s23, 1
      %p62 = por %p60, %p61
      %p63 = scmp.ne.s32.totalorder %s54, %s55
      %p64 = scmp.eq.s32.totalorder %s23, 0
      %p65 = por %p63, %p64
      %p66 = scmp.ne.s32.totalorder %s54, %s55
      %p67 = scmp.eq.s32.totalorder %s24, 1
      %p68 = por %p66, %p67
      %p70 = scmp.ne.s32.totalorder %s55, %s69
      %p71 = scmp.eq.s32.totalorder %s24, 0
      %p72 = por %p70, %p71
      %s74 = sadd.s32 %s73, 1
      %p77 = scmp.eq.s32.totalorder %s18, 1
      %p78 = scmp.ne.s32.totalorder %s73, %s75
      %p79 = scmp.eq.s32.totalorder %s18, 0
      %p80 = por %p78, %p79
      %p81 = scmp.ne.s32.totalorder %s73, %s75
      %p82 = scmp.eq.s32.totalorder %s23, 1
      %p83 = por %p81, %p82
      %p84 = scmp.ne.s32.totalorder %s75, %s76
      %p85 = scmp.eq.s32.totalorder %s23, 0
      %p86 = por %p84, %p85
      %p87 = scmp.ne.s32.totalorder %s75, %s76
      %p88 = scmp.eq.s32.totalorder %s24, 1
      %p89 = por %p87, %p88
      %p91 = scmp.ne.s32.totalorder %s76, %s90
      %p92 = scmp.eq.s32.totalorder %s24, 0
      %p93 = por %p91, %p92
      %s95 = sadd.s32 %s94, 1
      %p98 = scmp.eq.s32.totalorder %s18, 1
      %p99 = scmp.ne.s32.totalorder %s94, %s96
      %p100 = scmp.eq.s32.totalorder %s18, 0
      %p101 = por %p99, %p100
      %p102 = scmp.ne.s32.totalorder %s94, %s96
      %p103 = scmp.eq.s32.totalorder %s23, 1
      %p104 = por %p102, %p103
      %p105 = scmp.ne.s32.totalorder %s96, %s97
      %p106 = scmp.eq.s32.totalorder %s23, 0
      %p107 = por %p105, %p106
      %p108 = scmp.ne.s32.totalorder %s96, %s97
      %p109 = scmp.eq.s32.totalorder %s24, 1
      %p110 = por %p108, %p109
      %p112 = scmp.ne.s32.totalorder %s97, %s111
      %p113 = scmp.eq.s32.totalorder %s24, 0
      %p114 = por %p112, %p113
      %s116 = sadd.s32 %s115, 1
      %p119 = scmp.eq.s32.totalorder %s18, 1
      %p120 = scmp.ne.s32.totalorder %s115, %s117
      %p121 = scmp.eq.s32.totalorder %s18, 0
      %p122 = por %p120, %p121
      %p123 = scmp.ne.s32.totalorder %s115, %s117
      %p124 = scmp.eq.s32.totalorder %s23, 1
      %p125 = por %p123, %p124
      %p126 = scmp.ne.s32.totalorder %s117, %s118
      %p127 = scmp.eq.s32.totalorder %s23, 0
      %p128 = por %p126, %p127
      %p129 = scmp.ne.s32.totalorder %s117, %s118
      %p130 = scmp.eq.s32.totalorder %s24, 1
      %p131 = por %p129, %p130
      %p133 = scmp.ne.s32.totalorder %s118, %s132
      %p134 = scmp.eq.s32.totalorder %s24, 0
      %p135 = por %p133, %p134
      %s137 = sadd.s32 %s136, 1
      %p140 = scmp.eq.s32.totalorder %s18, 1
      %p141 = scmp.ne.s32.totalorder %s136, %s138
      %p142 = scmp.eq.s32.totalorder %s18, 0
      %p143 = por %p141, %p142
      %p144 = scmp.ne.s32.totalorder %s136, %s138
      %p145 = scmp.eq.s32.totalorder %s23, 1
      %p146 = por %p144, %p145
      %p147 = scmp.ne.s32.totalorder %s138, %s139
      %p148 = scmp.eq.s32.totalorder %s23, 0
      %p149 = por %p147, %p148
      %p150 = scmp.ne.s32.totalorder %s138, %s139
      %p151 = scmp.eq.s32.totalorder %s24, 1
      %p152 = por %p150, %p151
      %p154 = scmp.ne.s32.totalorder %s139, %s153
      %p155 = scmp.eq.s32.totalorder %s24, 0
      %p156 = por %p154, %p155
      %s158 = sadd.s32 %s157, 1
      %p161 = scmp.eq.s32.totalorder %s18, 1
      %p162 = scmp.ne.s32.totalorder %s157, %s159
      %p163 = scmp.eq.s32.totalorder %s18, 0
      %p164 = por %p162, %p163
      %p165 = scmp.ne.s32.totalorder %s157, %s159
      %p166 = scmp.eq.s32.totalorder %s23, 1
      %p167 = por %p165, %p166
      %p168 = scmp.ne.s32.totalorder %s159, %s160
      %p169 = scmp.eq.s32.totalorder %s23, 0
      %p170 = por %p168, %p169
      %p171 = scmp.ne.s32.totalorder %s159, %s160
      %p172 = scmp.eq.s32.totalorder %s24, 1
      %p173 = por %p171, %p172
      %p175 = scmp.ne.s32.totalorder %s160, %s174
      %p176 = scmp.eq.s32.totalorder %s24, 0
      %p177 = por %p175, %p176
      %s178 = ssub.s32 %s18, %s25
      %p179 = scmp.eq.s32.totalorder %s178, 0
      %s181 = sadd.s32 %s180, 1
      %s182 = scalar_select %p179, %s180, %s181
      %p185 = pneg %p179
      %p186 = scmp.eq.s32.totalorder %s18, 1
      %p187 = por %p185, %p186
      %p188 = scmp.ne.s32.totalorder %s180, %s183
      %p189 = scmp.eq.s32.totalorder %s18, 0
      %p190 = por %p188, %p189
      %p191 = scmp.ne.s32.totalorder %s180, %s183
      %p192 = scmp.eq.s32.totalorder %s23, 1
      %p193 = por %p191, %p192
      %p194 = scmp.ne.s32.totalorder %s183, %s184
      %p195 = scmp.eq.s32.totalorder %s23, 0
      %p196 = por %p194, %p195
      %p197 = scmp.ne.s32.totalorder %s183, %s184
      %p198 = scmp.eq.s32.totalorder %s24, 1
      %p199 = por %p197, %p198
      %p201 = scmp.ne.s32.totalorder %s184, %s200
      %p202 = scmp.eq.s32.totalorder %s24, 0
      %p203 = por %p201, %p202
      %p204 = scmp.le.s32.totalorder 1, %s18
      %p205 = scmp.lt.s32.totalorder %s18, 3
      %p206 = pnand %p204, %p205
      %p207 = pneg %p206
      // Predicated region
      $region9: #{tpu_custom_call.1} parent=5 // pred_check
        _
      $region10: #{tpu_custom_call.1} parent=5 // pred_check_branch
        %209 = sbr.rel (%p206) target = $region12
      $region11: #{tpu_custom_call.1} parent=5 // pred_region
        %s210 = ssub.s32 %s18, 1
        // Predicated region
        $region13: #{tpu_custom_call.1} parent=11 // pred_check
          %p211 = pneg %p65
        $region14: #{tpu_custom_call.1} parent=11 // pred_check_branch
          %213 = sbr.rel (%p211) target = $region16
        $region15: #{tpu_custom_call.1} parent=11 // pred_region
          _
        $region16: #{tpu_custom_call.1} parent=11 // pred_fallthru
          _
        // Predicated region
        $region17: #{tpu_custom_call.1} parent=11 // pred_check
          %p214 = pneg %p86
        $region18: #{tpu_custom_call.1} parent=11 // pred_check_branch
          %216 = sbr.rel (%p214) target = $region20
        $region19: #{tpu_custom_call.1} parent=11 // pred_region
          _
        $region20: #{tpu_custom_call.1} parent=11 // pred_fallthru
          _
        // Predicated region
        $region21: #{tpu_custom_call.1} parent=11 // pred_check
          %p217 = pneg %p107
        $region22: #{tpu_custom_call.1} parent=11 // pred_check_branch
          %219 = sbr.rel (%p217) target = $region24
        $region23: #{tpu_custom_call.1} parent=11 // pred_region
          %s221 = ssub.s32 4096, 4096
          %222 = vsyncadd [#allocation3], %s221
          %s223 = sshll.u32 [#allocation2], 4
          %s224 = int_to_ptr.vmem [resolvable:$true] %s223
          %229 = dma.hbm_to_vmem [thread:$0]  %s3, 4096, %s224, [#allocation3], 128, 128, 8
        $region24: #{tpu_custom_call.1} parent=11 // pred_fallthru
          _
        // Predicated region
        $region25: #{tpu_custom_call.1} parent=11 // pred_check
          %p230 = pneg %p128
        $region26: #{tpu_custom_call.1} parent=11 // pred_check_branch
          %232 = sbr.rel (%p230) target = $region28
        $region27: #{tpu_custom_call.1} parent=11 // pred_region
          _
        $region28: #{tpu_custom_call.1} parent=11 // pred_fallthru
          _
        // Predicated region
        $region29: #{tpu_custom_call.1} parent=11 // pred_check
          %p233 = pneg %p149
        $region30: #{tpu_custom_call.1} parent=11 // pred_check_branch
          %235 = sbr.rel (%p233) target = $region32
        $region31: #{tpu_custom_call.1} parent=11 // pred_region
          %s237 = ssub.s32 2048, 2048
          %238 = vsyncadd [#allocation6], %s237
          %s239 = sshll.u32 [#allocation5], 4
          %s240 = int_to_ptr.vmem [resolvable:$true] %s239
          %245 = dma.hbm_to_vmem [thread:$0]  %s5, 2048, %s240, [#allocation6], 128, 128, 8
        $region32: #{tpu_custom_call.1} parent=11 // pred_fallthru
          _
        // Predicated region
        $region33: #{tpu_custom_call.1} parent=11 // pred_check
          %p246 = pneg %p170
        $region34: #{tpu_custom_call.1} parent=11 // pred_check_branch
          %248 = sbr.rel (%p246) target = $region36
        $region35: #{tpu_custom_call.1} parent=11 // pred_region
          _
        $region36: #{tpu_custom_call.1} parent=11 // pred_fallthru
          _
      $region12: #{tpu_custom_call.1} parent=5 // pred_fallthru
        _
      %p249 = scmp.lt.s32.totalorder %s18, 2
      // Predicated region
      $region37: #{tpu_custom_call.1} parent=5 // pred_check
        %p250 = pneg %p249
      $region38: #{tpu_custom_call.1} parent=5 // pred_check_branch
        %252 = sbr.rel (%p250) target = $region40
      $region39: #{tpu_custom_call.1} parent=5 // pred_region
        // Predicated region
        $region41: #{tpu_custom_call.1} parent=39 // pred_check
          %p253 = pneg %p38
        $region42: #{tpu_custom_call.1} parent=39 // pred_check_branch
          %255 = sbr.rel (%p253) target = $region44
        $region43: #{tpu_custom_call.1} parent=39 // pred_region
          %s256 = smul.u32 3, %s18
          %p257 = scmp.lt.s32.totalorder %s256, 5
          %s258 = scalar_select %p257, %s256, 5
          %s259 = smul.addr %s258, 8
          %s260 = scalar_lea.vmem %s0, %s259
          %s261 = smul.u32 3, %s18
        $region44: #{tpu_custom_call.1} parent=39 // pred_fallthru
          _
      $region40: #{tpu_custom_call.1} parent=5 // pred_fallthru
        _
      %p262 = scmp.le.s32.totalorder 1, %s18
      %p263 = scmp.lt.s32.totalorder %s18, 3
      %p264 = pnand %p262, %p263
      %p265 = pneg %p264
      // Predicated region
      $region45: #{tpu_custom_call.1} parent=5 // pred_check
        _
      $region46: #{tpu_custom_call.1} parent=5 // pred_check_branch
        %267 = sbr.rel (%p264) target = $region48
      $region47: #{tpu_custom_call.1} parent=5 // pred_region
        %s268 = ssub.s32 %s18, 1
        // Predicated region
        $region49: #{tpu_custom_call.1} parent=47 // pred_check
          %p269 = pneg %p107
        $region50: #{tpu_custom_call.1} parent=47 // pred_check_branch
          %271 = sbr.rel (%p269) target = $region52
        $region51: #{tpu_custom_call.1} parent=47 // pred_region
          %272 = dma.done [#allocation3], 4096
        $region52: #{tpu_custom_call.1} parent=47 // pred_fallthru
          _
        // Predicated region
        $region53: #{tpu_custom_call.1} parent=47 // pred_check
          %p273 = pneg %p149
        $region54: #{tpu_custom_call.1} parent=47 // pred_check_branch
          %275 = sbr.rel (%p273) target = $region56
        $region55: #{tpu_custom_call.1} parent=47 // pred_region
          %276 = dma.done [#allocation6], 2048
        $region56: #{tpu_custom_call.1} parent=47 // pred_fallthru
          _
        %s277 = smul.u32 3, %s23
        %p278 = scmp.lt.s32.totalorder %s277, 5
        %s279 = scalar_select %p278, %s277, 5
        %s280 = smul.addr %s279, 8
        %s281 = scalar_lea.vmem %s0, %s280
        %p282 = pneg %p44
        %p283 = pneg %p41
        %p284 = pneg %p65
        %p285 = pneg %p62
        %p286 = pneg %p86
        %p287 = pneg %p83
        %p288 = pneg %p107
        %p289 = pneg %p104
        %p290 = pneg %p128
        %p291 = pneg %p125
        %p292 = pneg %p149
        %p293 = pneg %p146
        %p294 = pneg %p170
        %p295 = pneg %p167
        %p296 = pneg %p196
        %p297 = pneg %p193
        %s298 = sand.u32 %s183, 1
        %s299 = scalar_lea.sflag [#allocation4], %s298
        %s300 = sand.u32 %s183, 1
        %s301 = smul.addr %s300, 24
        %s302 = scalar_lea.vmem [#allocation7], %s301
        %s303 = smul.u32 3, %s23
        %p304 = scmp.lt.s32.totalorder %s303, 5
        %s305 = scalar_select %p304, %s303, 5
        %s306 = smul.addr %s305, 8
        %s307 = scalar_lea.vmem %s0, %s306
        %s308 = smul.u32 3, %s23
        %s309 = smul.u32 3, %s23
        %v310 = vld [vmem:[%s307] sm:$0xff]
        %v311 = vld [vmem:[%s307 + $0x8] sm:$0xff]
        %v312 = vld [vmem:[%s307 + $0x10] sm:$0xff]
        %v313 = vld [vmem:[%s1] sm:$0xff]
        %v314 = vld [vmem:[%s1 + $0x8] sm:$0xff]
        %v315 = vld [vmem:[%s2] sm:$0x1]
        %v317 = vlaneseq
        %v318 = vshrl.u32 %v317, 7
        %v319 = vsub.s32 0, %v318
        %v320 = vrot.slane %v315, %v319
        %vm322 = vcmask 130048
        %v324 = vsel %vm322, %v310, 0
        %v327 = vsel %vm322, %v311, 0
        %v330 = vsel %vm322, %v312, 0
        %332 = vmatprep.subr.mxu0 0.0
        %333 = vmatpush1.msra.mxu0 0.0
        %334 = vmatprep.subr.mxu0 0.0
        %335 = vmatpush1.msra.mxu0 0.0
        %336 = vmatprep.subr.mxu0 0.0
        %337 = vmatpush1.msra.mxu0 0.0
        %338 = vmatprep.subr.mxu0 0.0
        %339 = vmatpush1.msra.mxu0 0.0
        %340 = vmatprep.subr.mxu0 0.0
        %341 = vmatpush1.msra.mxu0 0.0
        %342 = vmatprep.subr.mxu0 0.0
        %343 = vmatpush1.msra.mxu0 0.0
        %344 = vmatprep.subr.mxu0 0.0
        %345 = vmatpush1.msra.mxu0 0.0
        %346 = vmatprep.subr.mxu0 0.0
        %347 = vmatpush1.msra.mxu0 0.0
        %348 = vmatprep.subr.mxu0 0.0
        %349 = vmatpush1.msra.mxu0 0.0
        %350 = vmatprep.subr.mxu0 0.0
        %351 = vmatpush1.msra.mxu0 0.0
        %352 = vmatprep.subr.mxu0 0.0
        %353 = vmatpush1.msra.mxu0 0.0
        %354 = vmatprep.subr.mxu0 0.0
        %355 = vmatpush1.msra.mxu0 0.0
        %356 = vmatprep.subr.mxu0 0.0
        %357 = vmatpush1.msra.mxu0 0.0
        %358 = vmatprep.subr.mxu0 0.0
        %359 = vmatpush1.msra.mxu0 0.0
        %360 = vmatprep.subr.mxu0 0.0
        %361 = vmatpush1.msra.mxu0 %v314
        %362 = vmatprep.subr.mxu0 0.0
        %363 = vmatpush1.msra.mxu0 %v313
        %364 = vmatprep.subr.mxu0 0.0
        %365 = vmatpush2.msra.mxu0 0.0
        %366 = vmatprep.subr.mxu0 0.0
        %367 = vmatpush2.msra.mxu0 0.0
        %368 = vmatprep.subr.mxu0 0.0
        %369 = vmatpush2.msra.mxu0 0.0
        %370 = vmatprep.subr.mxu0 0.0
        %371 = vmatpush2.msra.mxu0 0.0
        %372 = vmatprep.subr.mxu0 0.0
        %373 = vmatpush2.msra.mxu0 0.0
        %374 = vmatprep.subr.mxu0 0.0
        %375 = vmatpush2.msra.mxu0 0.0
        %376 = vmatprep.subr.mxu0 0.0
        %377 = vmatpush2.msra.mxu0 0.0
        %378 = vmatprep.subr.mxu0 0.0
        %379 = vmatpush2.msra.mxu0 0.0
        %380 = vmatprep.subr.mxu0 0.0
        %381 = vmatpush2.msra.mxu0 0.0
        %382 = vmatprep.subr.mxu0 0.0
        %383 = vmatpush2.msra.mxu0 0.0
        %384 = vmatprep.subr.mxu0 0.0
        %385 = vmatpush2.msra.mxu0 0.0
        %386 = vmatprep.subr.mxu0 0.0
        %387 = vmatpush2.msra.mxu0 0.0
        %388 = vmatprep.subr.mxu0 0.0
        %389 = vmatpush2.msra.mxu0 0.0
        %390 = vmatprep.subr.mxu0 0.0
        %391 = vmatpush2.msra.mxu0 0.0
        %392 = vmatprep.subr.mxu0 0.0
        %393 = vmatpush2.msra.mxu0 0.0
        %394 = vmatprep.subr.mxu0 0.0
        %395 = vmatpush2.msra.mxu0 0.0
        %396 = vmatprep.mubr.f32.mxu0 0.0
        %397 = vmatmul.mubr.f32.gmra.mxu0 %v324
        %v398 = vpop.f32.mrf.mxu0
        %v399 = vadd.f32 %v320, %v398
        %v400 = vpop.f32.mrf.mxu0
        %401 = vmatprep.mubr.f32.mxu0 0.0
        %402 = vmatmul.mubr.f32.gmra.mxu0 %v327
        %v403 = vpop.f32.mrf.mxu0
        %v404 = vadd.f32 %v320, %v403
        %v405 = vpop.f32.mrf.mxu0
        %406 = vmatprep.mubr.f32.mxu0 0.0
        %407 = vmatmul.mubr.f32.gmra.mxu0 %v330
        %v408 = vpop.f32.mrf.mxu0
        %v409 = vadd.f32 %v320, %v408
        %v410 = vpop.f32.mrf.mxu0
        %411 = vdwg.mxu0
        %v412 = vtanh.pop %v399
        %v413 = vtanh.pop %v404
        %v414 = vtanh.pop %v409
        %v415 = vld [vmem:[#allocation2] sm:$0xff]
        %v416 = vld [vmem:[#allocation2 + $0x8] sm:$0xff]
        %v417 = vld [vmem:[#allocation2 + $0x10] sm:$0xff]
        %v418 = vld [vmem:[#allocation2 + $0x18] sm:$0xff]
        %v419 = vld [vmem:[#allocation2 + $0x20] sm:$0xff]
        %v420 = vld [vmem:[#allocation2 + $0x28] sm:$0xff]
        %v421 = vld [vmem:[#allocation2 + $0x30] sm:$0xff]
        %v422 = vld [vmem:[#allocation2 + $0x38] sm:$0xff]
        %v423 = vld [vmem:[#allocation2 + $0x40] sm:$0xff]
        %v424 = vld [vmem:[#allocation2 + $0x48] sm:$0xff]
        %v425 = vld [vmem:[#allocation2 + $0x50] sm:$0xff]
        %v426 = vld [vmem:[#allocation2 + $0x58] sm:$0xff]
        %v427 = vld [vmem:[#allocation2 + $0x60] sm:$0xff]
        %v428 = vld [vmem:[#allocation2 + $0x68] sm:$0xff]
        %v429 = vld [vmem:[#allocation2 + $0x70] sm:$0xff]
        %v430 = vld [vmem:[#allocation2 + $0x78] sm:$0xff]
        %v431 = vld [vmem:[%s4] sm:$0x1]
        %v433 = vlaneseq
        %v434 = vshrl.u32 %v433, 7
        %v435 = vsub.s32 0, %v434
        %v436 = vrot.slane %v431, %v435
        %438 = vmatprep.subr.mxu0 0.0
        %439 = vmatpush1.msra.mxu0 %v430
        %440 = vmatprep.subr.mxu0 0.0
        %441 = vmatpush1.msra.mxu0 %v429
        %442 = vmatprep.subr.mxu0 0.0
        %443 = vmatpush1.msra.mxu0 %v428
        %444 = vmatprep.subr.mxu0 0.0
        %445 = vmatpush1.msra.mxu0 %v427
        %446 = vmatprep.subr.mxu0 0.0
        %447 = vmatpush1.msra.mxu0 %v426
        %448 = vmatprep.subr.mxu0 0.0
        %449 = vmatpush1.msra.mxu0 %v425
        %450 = vmatprep.subr.mxu0 0.0
        %451 = vmatpush1.msra.mxu0 %v424
        %452 = vmatprep.subr.mxu0 0.0
        %453 = vmatpush1.msra.mxu0 %v423
        %454 = vmatprep.subr.mxu0 0.0
        %455 = vmatpush1.msra.mxu0 %v422
        %456 = vmatprep.subr.mxu0 0.0
        %457 = vmatpush1.msra.mxu0 %v421
        %458 = vmatprep.subr.mxu0 0.0
        %459 = vmatpush1.msra.mxu0 %v420
        %460 = vmatprep.subr.mxu0 0.0
        %461 = vmatpush1.msra.mxu0 %v419
        %462 = vmatprep.subr.mxu0 0.0
        %463 = vmatpush1.msra.mxu0 %v418
        %464 = vmatprep.subr.mxu0 0.0
        %465 = vmatpush1.msra.mxu0 %v417
        %466 = vmatprep.subr.mxu0 0.0
        %467 = vmatpush1.msra.mxu0 %v416
        %468 = vmatprep.subr.mxu0 0.0
        %469 = vmatpush1.msra.mxu0 %v415
        %470 = vmatprep.subr.mxu0 0.0
        %471 = vmatpush2.msra.mxu0 0.0
        %472 = vmatprep.subr.mxu0 0.0
        %473 = vmatpush2.msra.mxu0 0.0
        %474 = vmatprep.subr.mxu0 0.0
        %475 = vmatpush2.msra.mxu0 0.0
        %476 = vmatprep.subr.mxu0 0.0
        %477 = vmatpush2.msra.mxu0 0.0
        %478 = vmatprep.subr.mxu0 0.0
        %479 = vmatpush2.msra.mxu0 0.0
        %480 = vmatprep.subr.mxu0 0.0
        %481 = vmatpush2.msra.mxu0 0.0
        %482 = vmatprep.subr.mxu0 0.0
        %483 = vmatpush2.msra.mxu0 0.0
        %484 = vmatprep.subr.mxu0 0.0
        %485 = vmatpush2.msra.mxu0 0.0
        %486 = vmatprep.subr.mxu0 0.0
        %487 = vmatpush2.msra.mxu0 0.0
        %488 = vmatprep.subr.mxu0 0.0
        %489 = vmatpush2.msra.mxu0 0.0
        %490 = vmatprep.subr.mxu0 0.0
        %491 = vmatpush2.msra.mxu0 0.0
        %492 = vmatprep.subr.mxu0 0.0
        %493 = vmatpush2.msra.mxu0 0.0
        %494 = vmatprep.subr.mxu0 0.0
        %495 = vmatpush2.msra.mxu0 0.0
        %496 = vmatprep.subr.mxu0 0.0
        %497 = vmatpush2.msra.mxu0 0.0
        %498 = vmatprep.subr.mxu0 0.0
        %499 = vmatpush2.msra.mxu0 0.0
        %500 = vmatprep.subr.mxu0 0.0
        %501 = vmatpush2.msra.mxu0 0.0
        %502 = vmatprep.mubr.f32.mxu0 0.0
        %503 = vmatmul.mubr.f32.gmra.mxu0 %v412
        %v504 = vpop.f32.mrf.mxu0
        %v505 = vadd.f32 %v436, %v504
        %v506 = vpop.f32.mrf.mxu0
        %507 = vmatprep.mubr.f32.mxu0 0.0
        %508 = vmatmul.mubr.f32.gmra.mxu0 %v413
        %v509 = vpop.f32.mrf.mxu0
        %v510 = vadd.f32 %v436, %v509
        %v511 = vpop.f32.mrf.mxu0
        %512 = vmatprep.mubr.f32.mxu0 0.0
        %513 = vmatmul.mubr.f32.gmra.mxu0 %v414
        %v514 = vpop.f32.mrf.mxu0
        %v515 = vadd.f32 %v436, %v514
        %v516 = vpop.f32.mrf.mxu0
        %517 = vdwg.mxu0
        %v518 = vtanh.pop %v505
        %v519 = vtanh.pop %v510
        %v520 = vtanh.pop %v515
        %s521 = scalar_lea.vmem [#allocation2], 128
        %v522 = vld [vmem:[%s521] sm:$0xff]
        %v523 = vld [vmem:[%s521 + $0x8] sm:$0xff]
        %v524 = vld [vmem:[%s521 + $0x10] sm:$0xff]
        %v525 = vld [vmem:[%s521 + $0x18] sm:$0xff]
        %v526 = vld [vmem:[%s521 + $0x20] sm:$0xff]
        %v527 = vld [vmem:[%s521 + $0x28] sm:$0xff]
        %v528 = vld [vmem:[%s521 + $0x30] sm:$0xff]
        %v529 = vld [vmem:[%s521 + $0x38] sm:$0xff]
        %v530 = vld [vmem:[%s521 + $0x40] sm:$0xff]
        %v531 = vld [vmem:[%s521 + $0x48] sm:$0xff]
        %v532 = vld [vmem:[%s521 + $0x50] sm:$0xff]
        %v533 = vld [vmem:[%s521 + $0x58] sm:$0xff]
        %v534 = vld [vmem:[%s521 + $0x60] sm:$0xff]
        %v535 = vld [vmem:[%s521 + $0x68] sm:$0xff]
        %v536 = vld [vmem:[%s521 + $0x70] sm:$0xff]
        %v537 = vld [vmem:[%s521 + $0x78] sm:$0xff]
        %s538 = scalar_lea.vmem %s4, 1
        %v539 = vld [vmem:[%s538] sm:$0x1]
        %v541 = vlaneseq
        %v542 = vshrl.u32 %v541, 7
        %v543 = vsub.s32 0, %v542
        %v544 = vrot.slane %v539, %v543
        %546 = vmatprep.subr.mxu0 0.0
        %547 = vmatpush1.msra.mxu0 %v537
        %548 = vmatprep.subr.mxu0 0.0
        %549 = vmatpush1.msra.mxu0 %v536
        %550 = vmatprep.subr.mxu0 0.0
        %551 = vmatpush1.msra.mxu0 %v535
        %552 = vmatprep.subr.mxu0 0.0
        %553 = vmatpush1.msra.mxu0 %v534
        %554 = vmatprep.subr.mxu0 0.0
        %555 = vmatpush1.msra.mxu0 %v533
        %556 = vmatprep.subr.mxu0 0.0
        %557 = vmatpush1.msra.mxu0 %v532
        %558 = vmatprep.subr.mxu0 0.0
        %559 = vmatpush1.msra.mxu0 %v531
        %560 = vmatprep.subr.mxu0 0.0
        %561 = vmatpush1.msra.mxu0 %v530
        %562 = vmatprep.subr.mxu0 0.0
        %563 = vmatpush1.msra.mxu0 %v529
        %564 = vmatprep.subr.mxu0 0.0
        %565 = vmatpush1.msra.mxu0 %v528
        %566 = vmatprep.subr.mxu0 0.0
        %567 = vmatpush1.msra.mxu0 %v527
        %568 = vmatprep.subr.mxu0 0.0
        %569 = vmatpush1.msra.mxu0 %v526
        %570 = vmatprep.subr.mxu0 0.0
        %571 = vmatpush1.msra.mxu0 %v525
        %572 = vmatprep.subr.mxu0 0.0
        %573 = vmatpush1.msra.mxu0 %v524
        %574 = vmatprep.subr.mxu0 0.0
        %575 = vmatpush1.msra.mxu0 %v523
        %576 = vmatprep.subr.mxu0 0.0
        %577 = vmatpush1.msra.mxu0 %v522
        %578 = vmatprep.subr.mxu0 0.0
        %579 = vmatpush2.msra.mxu0 0.0
        %580 = vmatprep.subr.mxu0 0.0
        %581 = vmatpush2.msra.mxu0 0.0
        %582 = vmatprep.subr.mxu0 0.0
        %583 = vmatpush2.msra.mxu0 0.0
        %584 = vmatprep.subr.mxu0 0.0
        %585 = vmatpush2.msra.mxu0 0.0
        %586 = vmatprep.subr.mxu0 0.0
        %587 = vmatpush2.msra.mxu0 0.0
        %588 = vmatprep.subr.mxu0 0.0
        %589 = vmatpush2.msra.mxu0 0.0
        %590 = vmatprep.subr.mxu0 0.0
        %591 = vmatpush2.msra.mxu0 0.0
        %592 = vmatprep.subr.mxu0 0.0
        %593 = vmatpush2.msra.mxu0 0.0
        %594 = vmatprep.subr.mxu0 0.0
        %595 = vmatpush2.msra.mxu0 0.0
        %596 = vmatprep.subr.mxu0 0.0
        %597 = vmatpush2.msra.mxu0 0.0
        %598 = vmatprep.subr.mxu0 0.0
        %599 = vmatpush2.msra.mxu0 0.0
        %600 = vmatprep.subr.mxu0 0.0
        %601 = vmatpush2.msra.mxu0 0.0
        %602 = vmatprep.subr.mxu0 0.0
        %603 = vmatpush2.msra.mxu0 0.0
        %604 = vmatprep.subr.mxu0 0.0
        %605 = vmatpush2.msra.mxu0 0.0
        %606 = vmatprep.subr.mxu0 0.0
        %607 = vmatpush2.msra.mxu0 0.0
        %608 = vmatprep.subr.mxu0 0.0
        %609 = vmatpush2.msra.mxu0 0.0
        %610 = vmatprep.mubr.f32.mxu0 0.0
        %611 = vmatmul.mubr.f32.gmra.mxu0 %v518
        %v612 = vpop.f32.mrf.mxu0
        %v613 = vadd.f32 %v544, %v612
        %v614 = vpop.f32.mrf.mxu0
        %615 = vmatprep.mubr.f32.mxu0 0.0
        %616 = vmatmul.mubr.f32.gmra.mxu0 %v519
        %v617 = vpop.f32.mrf.mxu0
        %v618 = vadd.f32 %v544, %v617
        %v619 = vpop.f32.mrf.mxu0
        %620 = vmatprep.mubr.f32.mxu0 0.0
        %621 = vmatmul.mubr.f32.gmra.mxu0 %v520
        %v622 = vpop.f32.mrf.mxu0
        %v623 = vadd.f32 %v544, %v622
        %v624 = vpop.f32.mrf.mxu0
        %625 = vdwg.mxu0
        %v626 = vtanh.pop %v613
        %v627 = vtanh.pop %v618
        %v628 = vtanh.pop %v623
        %v629 = vld [vmem:[#allocation5] sm:$0xff]
        %v630 = vld [vmem:[#allocation5 + $0x8] sm:$0xff]
        %v631 = vld [vmem:[#allocation5 + $0x10] sm:$0xff]
        %v632 = vld [vmem:[#allocation5 + $0x18] sm:$0xff]
        %v633 = vld [vmem:[#allocation5 + $0x20] sm:$0xff]
        %v634 = vld [vmem:[#allocation5 + $0x28] sm:$0xff]
        %v635 = vld [vmem:[#allocation5 + $0x30] sm:$0xff]
        %v636 = vld [vmem:[#allocation5 + $0x38] sm:$0xff]
        %v637 = vld [vmem:[#allocation5 + $0x40] sm:$0xff]
        %v638 = vld [vmem:[#allocation5 + $0x48] sm:$0xff]
        %v639 = vld [vmem:[#allocation5 + $0x50] sm:$0xff]
        %v640 = vld [vmem:[#allocation5 + $0x58] sm:$0xff]
        %v641 = vld [vmem:[#allocation5 + $0x60] sm:$0xff]
        %v642 = vld [vmem:[#allocation5 + $0x68] sm:$0xff]
        %v643 = vld [vmem:[#allocation5 + $0x70] sm:$0xff]
        %v644 = vld [vmem:[#allocation5 + $0x78] sm:$0xff]
        %v645 = vld [vmem:[%s6] sm:$0x1]
        %v647 = vlaneseq
        %v648 = vshrl.u32 %v647, 7
        %v649 = vsub.s32 0, %v648
        %v650 = vrot.slane %v645, %v649
        %652 = vmatprep.subr.mxu0 0.0
        %653 = vmatpush1.msra.mxu0 %v644
        %654 = vmatprep.subr.mxu0 0.0
        %655 = vmatpush1.msra.mxu0 %v643
        %656 = vmatprep.subr.mxu0 0.0
        %657 = vmatpush1.msra.mxu0 %v642
        %658 = vmatprep.subr.mxu0 0.0
        %659 = vmatpush1.msra.mxu0 %v641
        %660 = vmatprep.subr.mxu0 0.0
        %661 = vmatpush1.msra.mxu0 %v640
        %662 = vmatprep.subr.mxu0 0.0
        %663 = vmatpush1.msra.mxu0 %v639
        %664 = vmatprep.subr.mxu0 0.0
        %665 = vmatpush1.msra.mxu0 %v638
        %666 = vmatprep.subr.mxu0 0.0
        %667 = vmatpush1.msra.mxu0 %v637
        %668 = vmatprep.subr.mxu0 0.0
        %669 = vmatpush1.msra.mxu0 %v636
        %670 = vmatprep.subr.mxu0 0.0
        %671 = vmatpush1.msra.mxu0 %v635
        %672 = vmatprep.subr.mxu0 0.0
        %673 = vmatpush1.msra.mxu0 %v634
        %674 = vmatprep.subr.mxu0 0.0
        %675 = vmatpush1.msra.mxu0 %v633
        %676 = vmatprep.subr.mxu0 0.0
        %677 = vmatpush1.msra.mxu0 %v632
        %678 = vmatprep.subr.mxu0 0.0
        %679 = vmatpush1.msra.mxu0 %v631
        %680 = vmatprep.subr.mxu0 0.0
        %681 = vmatpush1.msra.mxu0 %v630
        %682 = vmatprep.subr.mxu0 0.0
        %683 = vmatpush1.msra.mxu0 %v629
        %684 = vmatprep.subr.mxu0 0.0
        %685 = vmatpush2.msra.mxu0 0.0
        %686 = vmatprep.subr.mxu0 0.0
        %687 = vmatpush2.msra.mxu0 0.0
        %688 = vmatprep.subr.mxu0 0.0
        %689 = vmatpush2.msra.mxu0 0.0
        %690 = vmatprep.subr.mxu0 0.0
        %691 = vmatpush2.msra.mxu0 0.0
        %692 = vmatprep.subr.mxu0 0.0
        %693 = vmatpush2.msra.mxu0 0.0
        %694 = vmatprep.subr.mxu0 0.0
        %695 = vmatpush2.msra.mxu0 0.0
        %696 = vmatprep.subr.mxu0 0.0
        %697 = vmatpush2.msra.mxu0 0.0
        %698 = vmatprep.subr.mxu0 0.0
        %699 = vmatpush2.msra.mxu0 0.0
        %700 = vmatprep.subr.mxu0 0.0
        %701 = vmatpush2.msra.mxu0 0.0
        %702 = vmatprep.subr.mxu0 0.0
        %703 = vmatpush2.msra.mxu0 0.0
        %704 = vmatprep.subr.mxu0 0.0
        %705 = vmatpush2.msra.mxu0 0.0
        %706 = vmatprep.subr.mxu0 0.0
        %707 = vmatpush2.msra.mxu0 0.0
        %708 = vmatprep.subr.mxu0 0.0
        %709 = vmatpush2.msra.mxu0 0.0
        %710 = vmatprep.subr.mxu0 0.0
        %711 = vmatpush2.msra.mxu0 0.0
        %712 = vmatprep.subr.mxu0 0.0
        %713 = vmatpush2.msra.mxu0 0.0
        %714 = vmatprep.subr.mxu0 0.0
        %715 = vmatpush2.msra.mxu0 0.0
        %716 = vmatprep.mubr.f32.mxu0 0.0
        %717 = vmatmul.mubr.f32.gmra.mxu0 %v626
        %v718 = vpop.f32.mrf.mxu0
        %v719 = vadd.f32 %v650, %v718
        %v720 = vpop.f32.mrf.mxu0
        %721 = vmatprep.mubr.f32.mxu0 0.0
        %722 = vmatmul.mubr.f32.gmra.mxu0 %v627
        %v723 = vpop.f32.mrf.mxu0
        %v724 = vadd.f32 %v650, %v723
        %v725 = vpop.f32.mrf.mxu0
        %726 = vmatprep.mubr.f32.mxu0 0.0
        %727 = vmatmul.mubr.f32.gmra.mxu0 %v628
        %v728 = vpop.f32.mrf.mxu0
        %v729 = vadd.f32 %v650, %v728
        %v730 = vpop.f32.mrf.mxu0
        %731 = vdwg.mxu0
        %732 = vst [vmem:[%s302] sm:$0xff] %v719
        %733 = vst [vmem:[%s302 + $0x8] sm:$0xff] %v724
        %734 = vst [vmem:[%s302 + $0x10] sm:$0xff] %v729
        %s735 = sand.u32 %s183, 1
        %s736 = scalar_lea.sflag [#allocation4], %s735
        %s737 = sand.u32 %s183, 1
        %s738 = smul.addr %s737, 24
        %s739 = scalar_lea.vmem [#allocation7], %s738
        // Predicated region
        $region57: #{tpu_custom_call.1} parent=47 // pred_check
          %p740 = pneg %p193
        $region58: #{tpu_custom_call.1} parent=47 // pred_check_branch
          %742 = sbr.rel (%p740) target = $region60
        $region59: #{tpu_custom_call.1} parent=47 // pred_region
          %s743 = smul.u32 3, %s23
          %s745 = ssub.s32 384, 384
          %746 = vsyncadd %s736, %s745
          %s747 = smul.addr %s743, 128
          %s748 = scalar_lea.hbm %s7, %s747
          %s749 = sshll.u32 %s739, 4
          %s750 = int_to_ptr.vmem [resolvable:$true] %s749
          %755 = dma.vmem_to_hbm [thread:$0]  %s750, 384, %s748, %s736, 128, 128, 8
        $region60: #{tpu_custom_call.1} parent=47 // pred_fallthru
          _
      $region48: #{tpu_custom_call.1} parent=5 // pred_fallthru
        _
      %p756 = scmp.le.s32.totalorder 2, %s18
      // Predicated region
      $region61: #{tpu_custom_call.1} parent=5 // pred_check
        %p757 = pneg %p756
      $region62: #{tpu_custom_call.1} parent=5 // pred_check_branch
        %759 = sbr.rel (%p757) target = $region64
      $region63: #{tpu_custom_call.1} parent=5 // pred_region
        %s760 = ssub.s32 %s18, 2
        // Predicated region
        $region65: #{tpu_custom_call.1} parent=63 // pred_check
          %p761 = pneg %p199
        $region66: #{tpu_custom_call.1} parent=63 // pred_check_branch
          %763 = sbr.rel (%p761) target = $region68
        $region67: #{tpu_custom_call.1} parent=63 // pred_region
          %s764 = sand.u32 %s184, 1
          %s765 = scalar_lea.sflag [#allocation4], %s764
          %s766 = sand.u32 %s184, 1
          %s767 = smul.addr %s766, 24
          %s768 = scalar_lea.vmem [#allocation7], %s767
          %769 = dma.done %s765, 384
        $region68: #{tpu_custom_call.1} parent=63 // pred_fallthru
          _
      $region64: #{tpu_custom_call.1} parent=5 // pred_fallthru
        _
    $region6: #{tpu_custom_call.1} parent=1 // loop_footer
      %s22 = sadd.s32 1, %s18
    $region7: #{tpu_custom_call.1} parent=1 // loop_footer_branch
      %17 = sbr.rel target = $region3
    $region8: #{tpu_custom_call.1} parent=1 // loop_exit
      _
    %770 = vsyncpa [#allocation3], 1
    %s771 = scalar_lea.sflag [#allocation3], 1
    %772 = vsyncpa %s771, 1
    %773 = vsyncpa [#allocation6], 1
    %774 = vsyncpa [#allocation4], 1
    %s775 = scalar_lea.sflag [#allocation4], 1
    %776 = vsyncpa %s775, 1

</llo_original>
